<compile_context>
chip_gen: v5e
topology: v5e:2x2
jax: 0.10.0
libtpu: 0.0.40
codegen_flags: <defaults>
</compile_context>

<pallas_src>
import functools

import jax
import jax.numpy as jnp
from jax import lax
from jax.experimental import pallas as pl
from jax.experimental.pallas import tpu as pltpu


def _mlp_scorer_kernel(x_ref, w1t_ref, b1_ref, w2_ref, b2_ref, o_ref):
    # x_ref:   (tile, d_in)        activations, rows on sublanes
    # w1t_ref: (d_hidden, d_in)    first-layer weight, transposed
    # b1_ref:  (d_hidden, 1)
    # w2_ref:  (d_hidden, 1)
    # b2_ref:  (1,) in SMEM
    # o_ref:   (1, 1, tile)        lane-dense score row
    x = x_ref[...]
    w1t = w1t_ref[...]

    # h_t[j, i] = sum_k W1t[j, k] * x[i, k] == (x @ W1)[i, j]
    # (contract both operands on their last dim -> batch ends up on lanes)
    h_t = lax.dot_general(
        w1t, x,
        dimension_numbers=(((1,), (1,)), ((), ())),
        preferred_element_type=jnp.float32)              # (d_hidden, tile)
    h_t = jnp.maximum(h_t + b1_ref[...], 0.0)            # bias bcast over lanes

    # Second layer: reduce over hidden dim (sublanes) -> (1, tile) on lanes.
    s = jnp.sum(h_t * w2_ref[...], axis=0, keepdims=True)
    s = s + b2_ref[0]
    o_ref[0] = jax.nn.sigmoid(s).astype(o_ref.dtype)


@functools.partial(jax.jit, static_argnames=("tile_n",))
def mlp_scorer(audio, loc, w1, b1, w2, b2, *, tile_n=2048):
    """audio: (*batch, d_audio), loc: (*batch, d_loc).

    w1: (d_audio + d_loc, d_hidden)   (already transposed vs torch Linear)
    b1: (d_hidden,)
    w2: (d_hidden, 1)
    b2: (1,)
    returns: (*batch,) float32 scores in (0, 1).
    """
    batch_shape = audio.shape[:-1]
    d_audio = audio.shape[-1]
    d_loc = loc.shape[-1]
    d_in = d_audio + d_loc
    d_hidden = w1.shape[-1]

    # One concatenated activation stream; keep the callers' dtype (bf16 OK).
    x = jnp.concatenate(
        [audio.reshape(-1, d_audio), loc.reshape(-1, d_loc)], axis=-1)
    n = x.shape[0]
    cdt = x.dtype

    # Row tile: large (amortize per-grid-step overhead), multiple of 128 so
    # the lane-dense output row is unmasked, clamped so tiny batches don't
    # pad to thousands of rows.
    tile = min(int(tile_n), max(128, pl.cdiv(n, 128) * 128))
    tile = max(128, (tile // 128) * 128)

    n_pad = pl.cdiv(n, tile) * tile
    if n_pad != n:
        x = jnp.pad(x, ((0, n_pad - n), (0, 0)))
    num_tiles = n_pad // tile

    w1t = jnp.asarray(w1, cdt).T                         # (d_hidden, d_in)
    b1c = jnp.asarray(b1, cdt).reshape(d_hidden, 1)      # (d_hidden, 1)
    w2c = jnp.asarray(w2, cdt).reshape(d_hidden, 1)      # (d_hidden, 1)
    b2s = jnp.asarray(b2, jnp.float32).reshape(1)        # SMEM scalar

    out = pl.pallas_call(
        _mlp_scorer_kernel,
        out_shape=jax.ShapeDtypeStruct((num_tiles, 1, tile), jnp.float32),
        grid_spec=pltpu.PrefetchScalarGridSpec(
            num_scalar_prefetch=0,
            grid=(num_tiles,),
            in_specs=[
                pl.BlockSpec((tile, d_in), lambda i: (i, 0)),
                pl.BlockSpec((d_hidden, d_in), lambda i: (0, 0)),
                pl.BlockSpec((d_hidden, 1), lambda i: (0, 0)),
                pl.BlockSpec((d_hidden, 1), lambda i: (0, 0)),
                pl.BlockSpec(memory_space=pltpu.MemorySpace.SMEM),
            ],
            out_specs=pl.BlockSpec((1, 1, tile), lambda i: (i, 0, 0)),
        ),
        compiler_params=pltpu.CompilerParams(
            dimension_semantics=("parallel",)),
    )(x, w1t, b1c, w2c, b2s)

    out = out.reshape(n_pad)[:n]
    return out.reshape(batch_shape)


def _init_params(key, d_audio, d_loc, d_hidden):
    """Deterministic init mimicking torch.nn.Linear default (uniform +- 1/sqrt(fan_in))."""
    d_in = d_audio + d_loc
    k1, k2, k3, k4 = jax.random.split(key, 4)
    bound1 = 1.0 / jnp.sqrt(d_in)
    w1 = jax.random.uniform(k1, (d_in, d_hidden), jnp.float32, -bound1, bound1)
    b1 = jax.random.uniform(k2, (d_hidden,), jnp.float32, -bound1, bound1)
    bound2 = 1.0 / jnp.sqrt(d_hidden)
    w2 = jax.random.uniform(k3, (d_hidden, 1), jnp.float32, -bound2, bound2)
    b2 = jax.random.uniform(k4, (1,), jnp.float32, -bound2, bound2)
    return w1, b1, w2, b2


def _reference(audio, loc, w1, b1, w2, b2):
    x = jnp.concatenate([audio, loc], axis=-1)
    h = jax.nn.relu(x @ w1 + b1)
    s = jax.nn.sigmoid(h @ w2 + b2)
    return jnp.squeeze(s, -1)


if __name__ == "__main__":
    d_audio, d_loc, d_hidden = 16, 16, 32
    batch = (2, 4)  # *batch dims

    key = jax.random.PRNGKey(0)
    ka, kl, kp = jax.random.split(key, 3)
    audio = jax.random.normal(ka, batch + (d_audio,), jnp.float32)
    loc = jax.random.normal(kl, batch + (d_loc,), jnp.float32)
    w1, b1, w2, b2 = _init_params(kp, d_audio, d_loc, d_hidden)

    out = mlp_scorer(audio, loc, w1, b1, w2, b2)
    out = jax.block_until_ready(out)

    ref = _reference(audio, loc, w1, b1, w2, b2)
    assert out.shape == batch, (out.shape, batch)
    assert jnp.allclose(out, ref, atol=1e-5, rtol=1e-5), "mismatch vs reference"

    print("KERNEL_OK")
</pallas_src>

<mosaic_0001>
module attributes {stable_mosaic.version = 11 : i64} {
  func.func @_mlp_scorer_kernel(%arg0: i32, %arg1: memref<128x32xf32, #tpu.memory_space<vmem>>, %arg2: memref<32x32xf32, #tpu.memory_space<vmem>>, %arg3: memref<32x1xf32, #tpu.memory_space<vmem>>, %arg4: memref<32x1xf32, #tpu.memory_space<vmem>>, %arg5: memref<1xf32, #tpu.memory_space<smem>>, %arg6: memref<1x1x128xf32, #tpu.memory_space<vmem>>) attributes {dimension_semantics = [#tpu.dimension_semantics<parallel>], iteration_bounds = array<i64: 1>, scalar_prefetch = 0 : i64, scratch_operands = 0 : i64, tpu.core_type = #tpu.core_type<tc>, window_params = [{transform_indices = @transform_0, window_bounds = array<i64: 128, 32>}, {pipeline_mode = #tpu.pipeline_mode<synchronous>, transform_indices = @transform_1, window_bounds = array<i64: 32, 32>}, {pipeline_mode = #tpu.pipeline_mode<synchronous>, transform_indices = @transform_2, window_bounds = array<i64: 32, 1>}, {pipeline_mode = #tpu.pipeline_mode<synchronous>, transform_indices = @transform_3, window_bounds = array<i64: 32, 1>}, {transform_indices = @transform_4, window_bounds = array<i64: 1>}, {transform_indices = @transform_5, window_bounds = array<i64: 1, 1, 128>}]} {
    %c0 = arith.constant 0 : index
    %c0_0 = arith.constant 0 : index
    %0 = vector.load %arg1[%c0, %c0_0] : memref<128x32xf32, #tpu.memory_space<vmem>>, vector<128x32xf32>
    %c0_1 = arith.constant 0 : index
    %c0_2 = arith.constant 0 : index
    %1 = vector.load %arg2[%c0_1, %c0_2] : memref<32x32xf32, #tpu.memory_space<vmem>>, vector<32x32xf32>
    %cst = arith.constant dense<0.000000e+00> : vector<32x128xf32>
    %2 = tpu.matmul %1, %0, %cst {dimension_numbers = #tpu.dot_dimension_numbers<[1], [1], [0], [0], [0, 0, 1, 0], [], []>} : vector<32x32xf32>, vector<128x32xf32>, vector<32x128xf32> -> vector<32x128xf32>
    %c0_3 = arith.constant 0 : index
    %c0_4 = arith.constant 0 : index
    %3 = vector.load %arg3[%c0_3, %c0_4] : memref<32x1xf32, #tpu.memory_space<vmem>>, vector<32x1xf32>
    %4 = vector.broadcast %3 : vector<32x1xf32> to vector<32x128xf32>
    %5 = arith.addf %2, %4 : vector<32x128xf32>
    %cst_5 = arith.constant 0.000000e+00 : f32
    %6 = vector.broadcast %cst_5 : f32 to vector<32x128xf32>
    %7 = arith.maximumf %5, %6 : vector<32x128xf32>
    %c0_6 = arith.constant 0 : index
    %c0_7 = arith.constant 0 : index
    %8 = vector.load %arg4[%c0_6, %c0_7] : memref<32x1xf32, #tpu.memory_space<vmem>>, vector<32x1xf32>
    %9 = vector.broadcast %8 : vector<32x1xf32> to vector<32x128xf32>
    %10 = arith.mulf %7, %9 : vector<32x128xf32>
    %cst_8 = arith.constant dense<0.000000e+00> : vector<128xf32>
    %11 = vector.multi_reduction <add>, %10, %cst_8 [0] : vector<32x128xf32> to vector<128xf32>
    %12 = vector.shape_cast %11 : vector<128xf32> to vector<1x128xf32>
    %c0_9 = arith.constant 0 : index
    %13 = memref.load %arg5[%c0_9] : memref<1xf32, #tpu.memory_space<smem>>
    %14 = vector.broadcast %13 : f32 to vector<1x128xf32>
    %15 = arith.addf %12, %14 : vector<1x128xf32>
    %16 = arith.negf %15 : vector<1x128xf32>
    %17 = math.exp %16 : vector<1x128xf32>
    %cst_10 = arith.constant 1.000000e+00 : f32
    %18 = vector.broadcast %cst_10 : f32 to vector<1x128xf32>
    %19 = arith.addf %18, %17 : vector<1x128xf32>
    %20 = arith.divf %18, %19 : vector<1x128xf32>
    %c0_11 = arith.constant 0 : index
    %c0_12 = arith.constant 0 : index
    %c0_13 = arith.constant 0 : index
    %21 = vector.load %arg6[%c0_11, %c0_12, %c0_13] : memref<1x1x128xf32, #tpu.memory_space<vmem>>, vector<1x1x128xf32>
    %22 = vector.shape_cast %21 : vector<1x1x128xf32> to vector<1x128xf32>
    %23 = vector.shape_cast %20 : vector<1x128xf32> to vector<1x1x128xf32>
    tpu.vector_store %arg6[%c0_11, %c0_12, %c0_13], %23 {strides = array<i32>} : memref<1x1x128xf32, #tpu.memory_space<vmem>>, vector<1x1x128xf32>,
    return
  }
  func.func @transform_0(%arg0: i32) -> (i32, i32) {
    %c0_i32 = arith.constant 0 : i32
    %c0_i32_0 = arith.constant 0 : i32
    return %arg0, %c0_i32 : i32, i32
  }
  func.func @transform_1(%arg0: i32) -> (i32, i32) {
    %c0_i32 = arith.constant 0 : i32
    %c0_i32_0 = arith.constant 0 : i32
    %c0_i32_1 = arith.constant 0 : i32
    return %c0_i32, %c0_i32_0 : i32, i32
  }
  func.func @transform_2(%arg0: i32) -> (i32, i32) {
    %c0_i32 = arith.constant 0 : i32
    %c0_i32_0 = arith.constant 0 : i32
    %c0_i32_1 = arith.constant 0 : i32
    return %c0_i32, %c0_i32_0 : i32, i32
  }
  func.func @transform_3(%arg0: i32) -> (i32, i32) {
    %c0_i32 = arith.constant 0 : i32
    %c0_i32_0 = arith.constant 0 : i32
    %c0_i32_1 = arith.constant 0 : i32
    return %c0_i32, %c0_i32_0 : i32, i32
  }
  func.func @transform_4(%arg0: i32) -> i32 {
    %c0_i32 = arith.constant 0 : i32
    %c0_i32_0 = arith.constant 0 : i32
    return %c0_i32 : i32
  }
  func.func @transform_5(%arg0: i32) -> (i32, i32, i32) {
    %c0_i32 = arith.constant 0 : i32
    %c0_i32_0 = arith.constant 0 : i32
    %c0_i32_1 = arith.constant 0 : i32
    return %arg0, %c0_i32, %c0_i32_0 : i32, i32, i32
  }
}

</mosaic_0001>

<llo_original>
// kernel: mlp_scorer.1
$region0: #{mlp_scorer.1}
  #allocation0 [shape = 'u32[]', space=smem, size = 0x4, offset = 0x4, fixed_abs, tag = 'smem constant byte address 0x4 - core index']
  #allocation1 [shape = 'u32[72,128]{1,0:T(1,128)}', space=vmem, size = 0x9000, scoped, tag = 'internal scratch']
  #allocation2 [shape = 'f32[1]{0:T(128)S(6)}', space=smem, size = 0x200, scoped, tag = 'scoped memory for mlp_scorer.1']
  %s0 = inlined_call_operand.vmem [shape: f32[128,32], index: 0, kind: input, shape index: {}]
  %s1 = inlined_call_operand.vmem [shape: f32[32,32], index: 1, kind: input, shape index: {}]
  %s2 = inlined_call_operand.vmem [shape: f32[32,1], index: 2, kind: input, shape index: {}]
  %s3 = inlined_call_operand.vmem [shape: f32[32,1], index: 3, kind: input, shape index: {}]
  %s4 = inlined_call_operand.<no memory space> [shape: f32[1], index: 4, kind: input, shape index: {}]
  %s5 = inlined_call_operand.vmem [shape: f32[1,1,128], index: 5, kind: output, shape index: {}]
  %s6 = sld [smem:[#allocation0]]
  $region30: #{mlp_scorer.1} parent=0
    _
  %s8 = ssub.s32 1, %s6
  %s9 = scalar_select 0, %s8, %s6
  %10 = sst [smem:[#allocation2]] %s4
  // Predicated region
  $region2: #{mlp_scorer.1} parent=0 // pred_check
    _
  $region3: #{mlp_scorer.1} parent=0 // pred_check_branch
    %12 = sbr.rel (0) target = $region5
  $region4: #{mlp_scorer.1} parent=0 // pred_region
    _
  $region5: #{mlp_scorer.1} parent=0 // pred_fallthru
    _
  // Predicated region
  $region6: #{mlp_scorer.1} parent=0 // pred_check
    _
  $region7: #{mlp_scorer.1} parent=0 // pred_check_branch
    %14 = sbr.rel (0) target = $region9
  $region8: #{mlp_scorer.1} parent=0 // pred_region
    _
  $region9: #{mlp_scorer.1} parent=0 // pred_fallthru
    _
  // Predicated region
  $region10: #{mlp_scorer.1} parent=0 // pred_check
    _
  $region11: #{mlp_scorer.1} parent=0 // pred_check_branch
    %16 = sbr.rel (0) target = $region13
  $region12: #{mlp_scorer.1} parent=0 // pred_region
    _
  $region13: #{mlp_scorer.1} parent=0 // pred_fallthru
    _
  // Predicated region
  $region14: #{mlp_scorer.1} parent=0 // pred_check
    _
  $region15: #{mlp_scorer.1} parent=0 // pred_check_branch
    %18 = sbr.rel (0) target = $region17
  $region16: #{mlp_scorer.1} parent=0 // pred_region
    _
  $region17: #{mlp_scorer.1} parent=0 // pred_fallthru
    _
  // Predicated region
  $region18: #{mlp_scorer.1} parent=0 // pred_check
    _
  $region19: #{mlp_scorer.1} parent=0 // pred_check_branch
    %20 = sbr.rel (0) target = $region21
  $region20: #{mlp_scorer.1} parent=0 // pred_region
    _
  $region21: #{mlp_scorer.1} parent=0 // pred_fallthru
    _
  %v21 = vld [vmem:[%s0] sm:$0xff]
  %v22 = vld [vmem:[%s0 + $0x8] sm:$0xff]
  %v23 = vld [vmem:[%s0 + $0x10] sm:$0xff]
  %v24 = vld [vmem:[%s0 + $0x18] sm:$0xff]
  %v25 = vld [vmem:[%s0 + $0x20] sm:$0xff]
  %v26 = vld [vmem:[%s0 + $0x28] sm:$0xff]
  %v27 = vld [vmem:[%s0 + $0x30] sm:$0xff]
  %v28 = vld [vmem:[%s0 + $0x38] sm:$0xff]
  %v29 = vld [vmem:[%s0 + $0x40] sm:$0xff]
  %v30 = vld [vmem:[%s0 + $0x48] sm:$0xff]
  %v31 = vld [vmem:[%s0 + $0x50] sm:$0xff]
  %v32 = vld [vmem:[%s0 + $0x58] sm:$0xff]
  %v33 = vld [vmem:[%s0 + $0x60] sm:$0xff]
  %v34 = vld [vmem:[%s0 + $0x68] sm:$0xff]
  %v35 = vld [vmem:[%s0 + $0x70] sm:$0xff]
  %v36 = vld [vmem:[%s0 + $0x78] sm:$0xff]
  %v37 = vld [vmem:[%s1] sm:$0xff]
  %v38 = vld [vmem:[%s1 + $0x8] sm:$0xff]
  %v39 = vld [vmem:[%s1 + $0x10] sm:$0xff]
  %v40 = vld [vmem:[%s1 + $0x18] sm:$0xff]
  %v41 = vld [vmem:[%s2] sm:$0xff]
  %v42 = vld [vmem:[%s2 + $0x8] sm:$0xff]
  %v43 = vld [vmem:[%s2 + $0x10] sm:$0xff]
  %v44 = vld [vmem:[%s2 + $0x18] sm:$0xff]
  %46 = vset.pattern.permute.xlu0 0
  %47 = vperm.xlu0 %46, %v41
  %v48 = vpop.permute.xlu0 %47
  %51 = vset.pattern.permute.xlu0 0
  %52 = vperm.xlu0 %51, %v42
  %v53 = vpop.permute.xlu0 %52
  %56 = vset.pattern.permute.xlu0 0
  %57 = vperm.xlu0 %56, %v43
  %v58 = vpop.permute.xlu0 %57
  %61 = vset.pattern.permute.xlu0 0
  %62 = vperm.xlu0 %61, %v44
  %v63 = vpop.permute.xlu0 %62
  %vm65 = vcmask 261120
  %v67 = vsel %vm65, %v37, 0
  %v70 = vsel %vm65, %v38, 0
  %v73 = vsel %vm65, %v39, 0
  %v76 = vsel %vm65, %v40, 0
  %v79 = vsel %vm65, %v21, 0
  %v82 = vsel %vm65, %v22, 0
  %v85 = vsel %vm65, %v23, 0
  %v88 = vsel %vm65, %v24, 0
  %v91 = vsel %vm65, %v25, 0
  %v94 = vsel %vm65, %v26, 0
  %v97 = vsel %vm65, %v27, 0
  %v100 = vsel %vm65, %v28, 0
  %v103 = vsel %vm65, %v29, 0
  %v106 = vsel %vm65, %v30, 0
  %v109 = vsel %vm65, %v31, 0
  %v112 = vsel %vm65, %v32, 0
  %v115 = vsel %vm65, %v33, 0
  %v118 = vsel %vm65, %v34, 0
  %v121 = vsel %vm65, %v35, 0
  %v124 = vsel %vm65, %v36, 0
  %126 = vmatpush.xpose.msra.mxu0 %v124
  %127 = vmatpush.xpose.msra.mxu0 %v121
  %128 = vmatpush.xpose.msra.mxu0 %v118
  %129 = vmatpush.xpose.msra.mxu0 %v115
  %130 = vmatpush.xpose.msra.mxu0 %v112
  %131 = vmatpush.xpose.msra.mxu0 %v109
  %132 = vmatpush.xpose.msra.mxu0 %v106
  %133 = vmatpush.xpose.msra.mxu0 %v103
  %134 = vmatpush.xpose.msra.mxu0 %v100
  %135 = vmatpush.xpose.msra.mxu0 %v97
  %136 = vmatpush.xpose.msra.mxu0 %v94
  %137 = vmatpush.xpose.msra.mxu0 %v91
  %138 = vmatpush.xpose.msra.mxu0 %v88
  %139 = vmatpush.xpose.msra.mxu0 %v85
  %140 = vmatpush.xpose.msra.mxu0 %v82
  %141 = vmatpush.xpose.msra.mxu0 %v79
  %142 = vmatmul.f32.gmra.mxu0 %v67
  %v143 = vpop.f32.mrf.mxu0
  %v144 = vadd.f32 %v48, %v143
  %145 = vmatmul.f32.gmra.mxu0 %v70
  %v146 = vpop.f32.mrf.mxu0
  %v147 = vadd.f32 %v53, %v146
  %148 = vmatmul.f32.gmra.mxu0 %v73
  %v149 = vpop.f32.mrf.mxu0
  %v150 = vadd.f32 %v58, %v149
  %151 = vmatmul.f32.gmra.mxu0 %v76
  %v152 = vpop.f32.mrf.mxu0
  %v153 = vadd.f32 %v63, %v152
  %154 = vdwg.mxu0
  %v155 = vmax.f32 %v144, 0.0
  %v156 = vmax.f32 %v147, 0.0
  %v157 = vmax.f32 %v150, 0.0
  %v158 = vmax.f32 %v153, 0.0
  %v159 = vld [vmem:[%s3] sm:$0xff]
  %v160 = vld [vmem:[%s3 + $0x8] sm:$0xff]
  %v161 = vld [vmem:[%s3 + $0x10] sm:$0xff]
  %v162 = vld [vmem:[%s3 + $0x18] sm:$0xff]
  %164 = vset.pattern.permute.xlu0 0
  %165 = vperm.xlu0 %164, %v159
  %v166 = vpop.permute.xlu0 %165
  %169 = vset.pattern.permute.xlu0 0
  %170 = vperm.xlu0 %169, %v160
  %v171 = vpop.permute.xlu0 %170
  %174 = vset.pattern.permute.xlu0 0
  %175 = vperm.xlu0 %174, %v161
  %v176 = vpop.permute.xlu0 %175
  %179 = vset.pattern.permute.xlu0 0
  %180 = vperm.xlu0 %179, %v162
  %v181 = vpop.permute.xlu0 %180
  %v183 = vmul.f32 %v155, %v166
  %v184 = vmul.f32 %v156, %v171
  %v185 = vmul.f32 %v157, %v176
  %v186 = vmul.f32 %v158, %v181
  %v187 = vadd.f32 %v183, %v184
  %v188 = vadd.f32 %v187, %v185
  %v189 = vadd.f32 %v188, %v186
  %v190 = vrot.slane %v189, 4
  %v191 = vadd.f32 %v189, %v190
  %v192 = vrot.slane %v191, 2
  %v193 = vadd.f32 %v191, %v192
  %v194 = vrot.slane %v193, 1
  %v195 = vadd.f32 %v193, %v194
  %s196 = sld [smem:[#allocation2]]
  %v197 = vstv %s196
  %v198 = vadd.f32 %v195, %v197
  %v199 = vxor.u32 %v198, 2147483648
  %v200 = vmul.f32 %v199, 1.442695
  %v201 = vpow.pop %v200
  %v202 = vadd.f32 %v201, 1.0
  %v203 = vrcp.pop %v202
  %v204 = vmul.f32 %v202, %v203
  %v205 = vsub.f32 1.0, %v204
  %v206 = vmul.f32 %v203, %v205
  %v207 = vadd.f32 %v203, %v206
  %vm208 = vweird.f32 %v202
  %vm209 = vweird.f32 %v203
  %vm210 = vmor %vm208, %vm209
  %v211 = vsel %vm210, %v203, %v207
  %v212 = vand.u32 2147483647, %v202
  %vm213 = vcmp.eq.f32.partialorder %v212, 8.507059e+37
  %v214 = vand.u32 %v202, 2147483648
  %v215 = vor.u32 1.1754944e-38, %v214
  %v216 = vsel %vm213, %v215, %v211
  %v217 = vmul.f32 1.0, %v216
  %218 = vst [vmem:[%s5] sm:$0x1] %v217
  // Predicated region
  $region22: #{mlp_scorer.1} parent=0 // pred_check
    _
  $region23: #{mlp_scorer.1} parent=0 // pred_check_branch
    %220 = sbr.rel (0) target = $region25
  $region24: #{mlp_scorer.1} parent=0 // pred_region
    _
  $region25: #{mlp_scorer.1} parent=0 // pred_fallthru
    _
  // Predicated region
  $region26: #{mlp_scorer.1} parent=0 // pred_check
    _
  $region27: #{mlp_scorer.1} parent=0 // pred_check_branch
    %222 = sbr.rel (0) target = $region29
  $region28: #{mlp_scorer.1} parent=0 // pred_region
    _
  $region29: #{mlp_scorer.1} parent=0 // pred_fallthru
    _

</llo_original>
